<compile_context>
chip_gen: v7x
topology: tpu7x:2x2x1
jax: 0.10.0
libtpu: 0.0.40
codegen_flags: <defaults>
</compile_context>

<pallas_src>
import jax
import jax.numpy as jnp
from jax.experimental import pallas as pl
from jax.experimental.pallas import tpu as pltpu


def _decoder1_kernel(x_ref, w1, b1, w2, b2, w3, b3, w4, b4, o_ref):
    # x_ref: (1, 3, TL) NCL tile.  Weights: (cout, cin).  Biases: (cout, 1).
    x = x_ref[0]                                                   # (3, TL)

    # Layer 1: K=3 contraction -> three whole-vreg VPU FMAs (frees the MXU).
    h = (w1[:, 0:1] * x[0:1, :]
         + w1[:, 1:2] * x[1:2, :]
         + w1[:, 2:3] * x[2:3, :]
         + b1[...])                                                # (16, TL)
    h = jnp.maximum(h, 0.0)                                        # ReLU

    h = jnp.dot(w2[...], h, preferred_element_type=jnp.float32) + b2[...]  # (32, TL)
    h = jnp.maximum(h, 0.0)                                        # ReLU
    h = jnp.dot(w3[...], h, preferred_element_type=jnp.float32) + b3[...]  # (64, TL)
    h = jnp.maximum(h, 0.0)                                        # ReLU
    h = jnp.dot(w4[...], h, preferred_element_type=jnp.float32) + b4[...]  # (80, TL)
    o_ref[0] = jnp.tanh(h)                                         # Tanh


def decoder1_forward(encoder_stack, orig_shape, params, *, tile_l=1024):
    """encoder_stack: (N, 3, L) float32 in PyTorch NCL layout.
    orig_shape is unused (matches the PyTorch forward signature).
    Returns (N, 80, L) float32 (NCL), matching Decoder_1.forward."""
    del orig_shape
    N, C_in, L = encoder_stack.shape
    assert C_in == 3

    LANE = 128
    # Tile must be a lane multiple; don't make it bigger than the padded L.
    tile_l = max(LANE, (tile_l // LANE) * LANE)
    l_pad_min = pl.cdiv(L, LANE) * LANE
    tile_l = min(tile_l, l_pad_min)
    L_pad = pl.cdiv(L, tile_l) * tile_l

    x = encoder_stack
    if L_pad != L:
        x = jnp.pad(x, ((0, 0), (0, 0), (0, L_pad - L)))

    (w1, b1), (w2, b2), (w3, b3), (w4, b4) = params
    grid = (N, L_pad // tile_l)

    def wspec(shape):
        # Full-extent weight/bias block, resident for every grid step.
        return pl.BlockSpec(shape, lambda n, l: (0, 0))

    out = pl.pallas_call(
        _decoder1_kernel,
        out_shape=jax.ShapeDtypeStruct((N, 80, L_pad), jnp.float32),
        grid_spec=pltpu.PrefetchScalarGridSpec(
            num_scalar_prefetch=0,
            grid=grid,
            in_specs=[
                pl.BlockSpec((1, 3, tile_l), lambda n, l: (n, 0, l)),
                wspec((16, 3)), wspec((16, 1)),
                wspec((32, 16)), wspec((32, 1)),
                wspec((64, 32)), wspec((64, 1)),
                wspec((80, 64)), wspec((80, 1)),
            ],
            out_specs=pl.BlockSpec((1, 80, tile_l), lambda n, l: (n, 0, l)),
        ),
        compiler_params=pltpu.CompilerParams(
            dimension_semantics=("parallel", "parallel"),
        ),
    )(x, w1, b1, w2, b2, w3, b3, w4, b4)

    if L_pad != L:
        out = out[:, :, :L]
    return out


def init_params(key):
    """Deterministic synthetic weights.  Conv1d(k=1) weight (out, in, 1) is
    stored as (out, in) for the transposed matmul formulation; biases (out, 1)."""
    dims = [(3, 16), (16, 32), (32, 64), (64, 80)]
    params = []
    for (cin, cout) in dims:
        key, kw, kb = jax.random.split(key, 3)
        bound = 1.0 / jnp.sqrt(cin)  # PyTorch Conv1d default init range
        w = jax.random.uniform(kw, (cout, cin), jnp.float32, -bound, bound)
        b = jax.random.uniform(kb, (cout, 1), jnp.float32, -bound, bound)
        params.append((w, b))
    return params


if __name__ == "__main__":
    key = jax.random.PRNGKey(0)
    key, kx = jax.random.split(key)

    N, C, L = 2, 3, 16  # small shapes consistent with Conv1d(3, ...) input
    encoder_stack = jax.random.normal(kx, (N, C, L), jnp.float32)
    orig_shape = (N, C, L)  # unused by forward, kept for signature parity

    params = init_params(key)

    out = decoder1_forward(encoder_stack, orig_shape, params)
    out = jax.block_until_ready(out)
    assert out.shape == (N, 80, L), out.shape

    # Pure-JAX reference (same math, NCL layout) for a correctness check.
    h = encoder_stack
    for idx, (w, b) in enumerate(params):
        h = jnp.einsum("oc,ncl->nol", w, h) + b[None, :, :]
        h = jnp.maximum(h, 0.0) if idx < 3 else jnp.tanh(h)
    assert jnp.allclose(out, h, atol=1e-5, rtol=1e-5)

    print("KERNEL_OK")
</pallas_src>

<mosaic_0001>
module attributes {stable_mosaic.version = 11 : i64} {
  func.func @_decoder1_kernel(%arg0: i32, %arg1: i32, %arg2: memref<1x3x128xf32, #tpu.memory_space<vmem>>, %arg3: memref<16x3xf32, #tpu.memory_space<vmem>>, %arg4: memref<16x1xf32, #tpu.memory_space<vmem>>, %arg5: memref<32x16xf32, #tpu.memory_space<vmem>>, %arg6: memref<32x1xf32, #tpu.memory_space<vmem>>, %arg7: memref<64x32xf32, #tpu.memory_space<vmem>>, %arg8: memref<64x1xf32, #tpu.memory_space<vmem>>, %arg9: memref<80x64xf32, #tpu.memory_space<vmem>>, %arg10: memref<80x1xf32, #tpu.memory_space<vmem>>, %arg11: memref<1x80x128xf32, #tpu.memory_space<vmem>>) attributes {dimension_semantics = [#tpu.dimension_semantics<parallel>, #tpu.dimension_semantics<parallel>], iteration_bounds = array<i64: 2, 1>, scalar_prefetch = 0 : i64, scratch_operands = 0 : i64, tpu.core_type = #tpu.core_type<tc>, window_params = [{transform_indices = @transform_0, window_bounds = array<i64: 1, 3, 128>}, {pipeline_mode = #tpu.pipeline_mode<synchronous>, transform_indices = @transform_1, window_bounds = array<i64: 16, 3>}, {pipeline_mode = #tpu.pipeline_mode<synchronous>, transform_indices = @transform_2, window_bounds = array<i64: 16, 1>}, {pipeline_mode = #tpu.pipeline_mode<synchronous>, transform_indices = @transform_3, window_bounds = array<i64: 32, 16>}, {pipeline_mode = #tpu.pipeline_mode<synchronous>, transform_indices = @transform_4, window_bounds = array<i64: 32, 1>}, {pipeline_mode = #tpu.pipeline_mode<synchronous>, transform_indices = @transform_5, window_bounds = array<i64: 64, 32>}, {pipeline_mode = #tpu.pipeline_mode<synchronous>, transform_indices = @transform_6, window_bounds = array<i64: 64, 1>}, {pipeline_mode = #tpu.pipeline_mode<synchronous>, transform_indices = @transform_7, window_bounds = array<i64: 80, 64>}, {pipeline_mode = #tpu.pipeline_mode<synchronous>, transform_indices = @transform_8, window_bounds = array<i64: 80, 1>}, {transform_indices = @transform_9, window_bounds = array<i64: 1, 80, 128>}]} {
    %c0 = arith.constant 0 : index
    %c0_0 = arith.constant 0 : index
    %c0_1 = arith.constant 0 : index
    %0 = vector.load %arg2[%c0, %c0_0, %c0_1] : memref<1x3x128xf32, #tpu.memory_space<vmem>>, vector<1x3x128xf32>
    %1 = vector.shape_cast %0 : vector<1x3x128xf32> to vector<3x128xf32>
    %c0_2 = arith.constant 0 : index
    %c0_3 = arith.constant 0 : index
    %2 = vector.load %arg3[%c0_2, %c0_3] : memref<16x3xf32, #tpu.memory_space<vmem>>, vector<16x1xf32>
    %3 = vector.extract_strided_slice %1 {offsets = [0, 0], sizes = [1, 128], strides = [1, 1]} : vector<3x128xf32> to vector<1x128xf32>
    %4 = vector.broadcast %2 : vector<16x1xf32> to vector<16x128xf32>
    %5 = vector.broadcast %3 : vector<1x128xf32> to vector<16x128xf32>
    %6 = arith.mulf %4, %5 : vector<16x128xf32>
    %c0_4 = arith.constant 0 : index
    %c1 = arith.constant 1 : index
    %7 = vector.load %arg3[%c0_4, %c1] : memref<16x3xf32, #tpu.memory_space<vmem>>, vector<16x1xf32>
    %8 = vector.extract_strided_slice %1 {offsets = [1, 0], sizes = [1, 128], strides = [1, 1]} : vector<3x128xf32> to vector<1x128xf32>
    %9 = vector.broadcast %7 : vector<16x1xf32> to vector<16x128xf32>
    %10 = vector.broadcast %8 : vector<1x128xf32> to vector<16x128xf32>
    %11 = arith.mulf %9, %10 : vector<16x128xf32>
    %12 = arith.addf %6, %11 : vector<16x128xf32>
    %c0_5 = arith.constant 0 : index
    %c2 = arith.constant 2 : index
    %13 = vector.load %arg3[%c0_5, %c2] : memref<16x3xf32, #tpu.memory_space<vmem>>, vector<16x1xf32>
    %14 = vector.extract_strided_slice %1 {offsets = [2, 0], sizes = [1, 128], strides = [1, 1]} : vector<3x128xf32> to vector<1x128xf32>
    %15 = vector.broadcast %13 : vector<16x1xf32> to vector<16x128xf32>
    %16 = vector.broadcast %14 : vector<1x128xf32> to vector<16x128xf32>
    %17 = arith.mulf %15, %16 : vector<16x128xf32>
    %18 = arith.addf %12, %17 : vector<16x128xf32>
    %c0_6 = arith.constant 0 : index
    %c0_7 = arith.constant 0 : index
    %19 = vector.load %arg4[%c0_6, %c0_7] : memref<16x1xf32, #tpu.memory_space<vmem>>, vector<16x1xf32>
    %20 = vector.broadcast %19 : vector<16x1xf32> to vector<16x128xf32>
    %21 = arith.addf %18, %20 : vector<16x128xf32>
    %cst = arith.constant 0.000000e+00 : f32
    %22 = vector.broadcast %cst : f32 to vector<16x128xf32>
    %23 = arith.maximumf %21, %22 : vector<16x128xf32>
    %c0_8 = arith.constant 0 : index
    %c0_9 = arith.constant 0 : index
    %24 = vector.load %arg5[%c0_8, %c0_9] : memref<32x16xf32, #tpu.memory_space<vmem>>, vector<32x16xf32>
    %cst_10 = arith.constant dense<0.000000e+00> : vector<32x128xf32>
    %25 = tpu.matmul %24, %23, %cst_10 {dimension_numbers = #tpu.dot_dimension_numbers<[1], [0], [0], [1], [0, 0, 1, 1], [], []>} : vector<32x16xf32>, vector<16x128xf32>, vector<32x128xf32> -> vector<32x128xf32>
    %c0_11 = arith.constant 0 : index
    %c0_12 = arith.constant 0 : index
    %26 = vector.load %arg6[%c0_11, %c0_12] : memref<32x1xf32, #tpu.memory_space<vmem>>, vector<32x1xf32>
    %27 = vector.broadcast %26 : vector<32x1xf32> to vector<32x128xf32>
    %28 = arith.addf %25, %27 : vector<32x128xf32>
    %cst_13 = arith.constant 0.000000e+00 : f32
    %29 = vector.broadcast %cst_13 : f32 to vector<32x128xf32>
    %30 = arith.maximumf %28, %29 : vector<32x128xf32>
    %c0_14 = arith.constant 0 : index
    %c0_15 = arith.constant 0 : index
    %31 = vector.load %arg7[%c0_14, %c0_15] : memref<64x32xf32, #tpu.memory_space<vmem>>, vector<64x32xf32>
    %cst_16 = arith.constant dense<0.000000e+00> : vector<64x128xf32>
    %32 = tpu.matmul %31, %30, %cst_16 {dimension_numbers = #tpu.dot_dimension_numbers<[1], [0], [0], [1], [0, 0, 1, 1], [], []>} : vector<64x32xf32>, vector<32x128xf32>, vector<64x128xf32> -> vector<64x128xf32>
    %c0_17 = arith.constant 0 : index
    %c0_18 = arith.constant 0 : index
    %33 = vector.load %arg8[%c0_17, %c0_18] : memref<64x1xf32, #tpu.memory_space<vmem>>, vector<64x1xf32>
    %34 = vector.broadcast %33 : vector<64x1xf32> to vector<64x128xf32>
    %35 = arith.addf %32, %34 : vector<64x128xf32>
    %cst_19 = arith.constant 0.000000e+00 : f32
    %36 = vector.broadcast %cst_19 : f32 to vector<64x128xf32>
    %37 = arith.maximumf %35, %36 : vector<64x128xf32>
    %c0_20 = arith.constant 0 : index
    %c0_21 = arith.constant 0 : index
    %38 = vector.load %arg9[%c0_20, %c0_21] : memref<80x64xf32, #tpu.memory_space<vmem>>, vector<80x64xf32>
    %cst_22 = arith.constant dense<0.000000e+00> : vector<80x128xf32>
    %39 = tpu.matmul %38, %37, %cst_22 {dimension_numbers = #tpu.dot_dimension_numbers<[1], [0], [0], [1], [0, 0, 1, 1], [], []>} : vector<80x64xf32>, vector<64x128xf32>, vector<80x128xf32> -> vector<80x128xf32>
    %c0_23 = arith.constant 0 : index
    %c0_24 = arith.constant 0 : index
    %40 = vector.load %arg10[%c0_23, %c0_24] : memref<80x1xf32, #tpu.memory_space<vmem>>, vector<80x1xf32>
    %41 = vector.broadcast %40 : vector<80x1xf32> to vector<80x128xf32>
    %42 = arith.addf %39, %41 : vector<80x128xf32>
    %43 = math.tanh %42 : vector<80x128xf32>
    %c0_25 = arith.constant 0 : index
    %c0_26 = arith.constant 0 : index
    %c0_27 = arith.constant 0 : index
    %44 = vector.load %arg11[%c0_25, %c0_26, %c0_27] : memref<1x80x128xf32, #tpu.memory_space<vmem>>, vector<1x80x128xf32>
    %45 = vector.shape_cast %44 : vector<1x80x128xf32> to vector<80x128xf32>
    %46 = vector.shape_cast %43 : vector<80x128xf32> to vector<1x80x128xf32>
    tpu.vector_store %arg11[%c0_25, %c0_26, %c0_27], %46 {strides = array<i32>} : memref<1x80x128xf32, #tpu.memory_space<vmem>>, vector<1x80x128xf32>,
    return
  }
  func.func @transform_0(%arg0: i32, %arg1: i32) -> (i32, i32, i32) {
    %c0_i32 = arith.constant 0 : i32
    %c0_i32_0 = arith.constant 0 : i32
    return %arg0, %c0_i32, %arg1 : i32, i32, i32
  }
  func.func @transform_1(%arg0: i32, %arg1: i32) -> (i32, i32) {
    %c0_i32 = arith.constant 0 : i32
    %c0_i32_0 = arith.constant 0 : i32
    %c0_i32_1 = arith.constant 0 : i32
    return %c0_i32, %c0_i32_0 : i32, i32
  }
  func.func @transform_2(%arg0: i32, %arg1: i32) -> (i32, i32) {
    %c0_i32 = arith.constant 0 : i32
    %c0_i32_0 = arith.constant 0 : i32
    %c0_i32_1 = arith.constant 0 : i32
    return %c0_i32, %c0_i32_0 : i32, i32
  }
  func.func @transform_3(%arg0: i32, %arg1: i32) -> (i32, i32) {
    %c0_i32 = arith.constant 0 : i32
    %c0_i32_0 = arith.constant 0 : i32
    %c0_i32_1 = arith.constant 0 : i32
    return %c0_i32, %c0_i32_0 : i32, i32
  }
  func.func @transform_4(%arg0: i32, %arg1: i32) -> (i32, i32) {
    %c0_i32 = arith.constant 0 : i32
    %c0_i32_0 = arith.constant 0 : i32
    %c0_i32_1 = arith.constant 0 : i32
    return %c0_i32, %c0_i32_0 : i32, i32
  }
  func.func @transform_5(%arg0: i32, %arg1: i32) -> (i32, i32) {
    %c0_i32 = arith.constant 0 : i32
    %c0_i32_0 = arith.constant 0 : i32
    %c0_i32_1 = arith.constant 0 : i32
    return %c0_i32, %c0_i32_0 : i32, i32
  }
  func.func @transform_6(%arg0: i32, %arg1: i32) -> (i32, i32) {
    %c0_i32 = arith.constant 0 : i32
    %c0_i32_0 = arith.constant 0 : i32
    %c0_i32_1 = arith.constant 0 : i32
    return %c0_i32, %c0_i32_0 : i32, i32
  }
  func.func @transform_7(%arg0: i32, %arg1: i32) -> (i32, i32) {
    %c0_i32 = arith.constant 0 : i32
    %c0_i32_0 = arith.constant 0 : i32
    %c0_i32_1 = arith.constant 0 : i32
    return %c0_i32, %c0_i32_0 : i32, i32
  }
  func.func @transform_8(%arg0: i32, %arg1: i32) -> (i32, i32) {
    %c0_i32 = arith.constant 0 : i32
    %c0_i32_0 = arith.constant 0 : i32
    %c0_i32_1 = arith.constant 0 : i32
    return %c0_i32, %c0_i32_0 : i32, i32
  }
  func.func @transform_9(%arg0: i32, %arg1: i32) -> (i32, i32, i32) {
    %c0_i32 = arith.constant 0 : i32
    %c0_i32_0 = arith.constant 0 : i32
    return %arg0, %c0_i32, %arg1 : i32, i32, i32
  }
}

</mosaic_0001>

<llo_original>
// kernel: tpu_custom_call.1
$region0: #{tpu_custom_call.1}
  #allocation0 [shape = 'u32[]', space=smem, size = 0x4, offset = 0x4, fixed_abs, tag = 'smem constant byte address 0x4 - core index']
  #allocation1 [shape = 'u32[144,128]{1,0:T(1,128)}', space=vmem, size = 0x12000, scoped, tag = 'internal scratch']
  %s0 = inlined_call_operand.vmem [shape: f32[2,3,128], index: 0, kind: input, shape index: {}]
  %s1 = inlined_call_operand.vmem [shape: f32[16,3], index: 1, kind: input, shape index: {}]
  %s2 = inlined_call_operand.vmem [shape: f32[16,1], index: 2, kind: input, shape index: {}]
  %s3 = inlined_call_operand.vmem [shape: f32[32,16], index: 3, kind: input, shape index: {}]
  %s4 = inlined_call_operand.vmem [shape: f32[32,1], index: 4, kind: input, shape index: {}]
  %s5 = inlined_call_operand.vmem [shape: f32[64,32], index: 5, kind: input, shape index: {}]
  %s6 = inlined_call_operand.vmem [shape: f32[64,1], index: 6, kind: input, shape index: {}]
  %s7 = inlined_call_operand.vmem [shape: f32[80,64], index: 7, kind: input, shape index: {}]
  %s8 = inlined_call_operand.vmem [shape: f32[80,1], index: 8, kind: input, shape index: {}]
  %s9 = inlined_call_operand.hbm [shape: f32[2,80,128], index: 9, kind: output, shape index: {}]
  %s10 = sld [smem:[#allocation0]]
  $region69: #{tpu_custom_call.1} parent=0
    _
  %s12 = ssub.s32 1, %s10
  %s13 = scalar_select 0, %s12, %s10
  $region1: #{tpu_custom_call.1} parent=0
    #allocation2 [shape = 'u8[81920]{0}', space=vmem, size = 0x14000, scoped, tag = 'output window, operand 0']
    #allocation3 [shape = 's32[2]{0}', space=sflag, size = 0x8, scoped, tag = 'scoped memory for tpu_custom_call.1']
    %14 = vsyncpa [#allocation3], 0
    %s15 = scalar_lea.sflag [#allocation3], 1
    %16 = vsyncpa %s15, 0
    loop: start=0, step=1, limit=4
    $region2: #{tpu_custom_call.1} parent=1 // loop_pre_header
      _
    $region3: #{tpu_custom_call.1} parent=1 // loop_header
      %s18 = sphi 0, %s22
      %p19 = scmp.ge.s32.totalorder %s18, 4
      %s25 = sphi 0, %s37
      %s26 = sphi 0, %s33
      %s27 = sphi 0, %s25
      %s28 = sphi 0, %s26
      %s29 = sphi 0, %s27
      %s30 = sphi 0, %s28
      %s42 = sphi 0, %s44
      %s45 = sphi 0, %s42
      %s46 = sphi 0, %s45
      %s62 = sphi 0, %s46
      %s66 = sphi 0, %s66
      %s68 = sphi 0, %s66
      %s69 = sphi 0, %s68
      %s83 = sphi 0, %s69
      %s87 = sphi 0, %s87
      %s89 = sphi 0, %s87
      %s90 = sphi 0, %s89
      %s104 = sphi 0, %s90
      %s108 = sphi 0, %s108
      %s110 = sphi 0, %s108
      %s111 = sphi 0, %s110
      %s125 = sphi 0, %s111
      %s129 = sphi 0, %s129
      %s131 = sphi 0, %s129
      %s132 = sphi 0, %s131
      %s146 = sphi 0, %s132
      %s150 = sphi 0, %s150
      %s152 = sphi 0, %s150
      %s153 = sphi 0, %s152
      %s167 = sphi 0, %s153
      %s171 = sphi 0, %s171
      %s173 = sphi 0, %s171
      %s174 = sphi 0, %s173
      %s188 = sphi 0, %s174
      %s192 = sphi 0, %s192
      %s194 = sphi 0, %s192
      %s195 = sphi 0, %s194
      %s209 = sphi 0, %s195
      %s213 = sphi 0, %s213
      %s215 = sphi 0, %s213
      %s216 = sphi 0, %s215
      %s230 = sphi 0, %s216
      %s238 = sphi 0, %s240
      %s241 = sphi 0, %s238
      %s242 = sphi 0, %s241
      %s258 = sphi 0, %s242
    $region4: #{tpu_custom_call.1} parent=1 // loop_header_branch
      %21 = sbr.rel (%p19) target = $region8
    $region5: #{tpu_custom_call.1} parent=1 // loop_body
      %s23 = ssub.s32 %s18, 1
      %s24 = ssub.s32 %s18, 2
      %s31 = sadd.s32 1, %s26
      %p32 = scmp.ge.s32.totalorder %s31, 1
      %s33 = scalar_select %p32, 0, %s31
      %s34 = sadd.s32 1, %s25
      %s35 = scalar_select %p32, %s34, %s25
      %p36 = scmp.ge.s32.totalorder %s35, 2
      %s37 = scalar_select %p36, 0, %s35
      %s38 = ssub.s32 %s25, %s37
      %s39 = ssub.s32 %s26, %s33
      %s40 = sor.u32 %s38, %s39
      %p41 = scmp.eq.s32.totalorder %s40, 0
      %s43 = sadd.s32 %s42, 1
      %s44 = scalar_select %p41, %s42, %s43
      %p47 = pneg %p41
      %p48 = scmp.eq.s32.totalorder %s18, 1
      %p49 = por %p47, %p48
      %p50 = scmp.ne.s32.totalorder %s42, %s45
      %p51 = scmp.eq.s32.totalorder %s18, 0
      %p52 = por %p50, %p51
      %p53 = scmp.ne.s32.totalorder %s42, %s45
      %p54 = scmp.eq.s32.totalorder %s23, 1
      %p55 = por %p53, %p54
      %p56 = scmp.ne.s32.totalorder %s45, %s46
      %p57 = scmp.eq.s32.totalorder %s23, 0
      %p58 = por %p56, %p57
      %p59 = scmp.ne.s32.totalorder %s45, %s46
      %p60 = scmp.eq.s32.totalorder %s24, 1
      %p61 = por %p59, %p60
      %p63 = scmp.ne.s32.totalorder %s46, %s62
      %p64 = scmp.eq.s32.totalorder %s24, 0
      %p65 = por %p63, %p64
      %s67 = sadd.s32 %s66, 1
      %p70 = scmp.eq.s32.totalorder %s18, 1
      %p71 = scmp.ne.s32.totalorder %s66, %s68
      %p72 = scmp.eq.s32.totalorder %s18, 0
      %p73 = por %p71, %p72
      %p74 = scmp.ne.s32.totalorder %s66, %s68
      %p75 = scmp.eq.s32.totalorder %s23, 1
      %p76 = por %p74, %p75
      %p77 = scmp.ne.s32.totalorder %s68, %s69
      %p78 = scmp.eq.s32.totalorder %s23, 0
      %p79 = por %p77, %p78
      %p80 = scmp.ne.s32.totalorder %s68, %s69
      %p81 = scmp.eq.s32.totalorder %s24, 1
      %p82 = por %p80, %p81
      %p84 = scmp.ne.s32.totalorder %s69, %s83
      %p85 = scmp.eq.s32.totalorder %s24, 0
      %p86 = por %p84, %p85
      %s88 = sadd.s32 %s87, 1
      %p91 = scmp.eq.s32.totalorder %s18, 1
      %p92 = scmp.ne.s32.totalorder %s87, %s89
      %p93 = scmp.eq.s32.totalorder %s18, 0
      %p94 = por %p92, %p93
      %p95 = scmp.ne.s32.totalorder %s87, %s89
      %p96 = scmp.eq.s32.totalorder %s23, 1
      %p97 = por %p95, %p96
      %p98 = scmp.ne.s32.totalorder %s89, %s90
      %p99 = scmp.eq.s32.totalorder %s23, 0
      %p100 = por %p98, %p99
      %p101 = scmp.ne.s32.totalorder %s89, %s90
      %p102 = scmp.eq.s32.totalorder %s24, 1
      %p103 = por %p101, %p102
      %p105 = scmp.ne.s32.totalorder %s90, %s104
      %p106 = scmp.eq.s32.totalorder %s24, 0
      %p107 = por %p105, %p106
      %s109 = sadd.s32 %s108, 1
      %p112 = scmp.eq.s32.totalorder %s18, 1
      %p113 = scmp.ne.s32.totalorder %s108, %s110
      %p114 = scmp.eq.s32.totalorder %s18, 0
      %p115 = por %p113, %p114
      %p116 = scmp.ne.s32.totalorder %s108, %s110
      %p117 = scmp.eq.s32.totalorder %s23, 1
      %p118 = por %p116, %p117
      %p119 = scmp.ne.s32.totalorder %s110, %s111
      %p120 = scmp.eq.s32.totalorder %s23, 0
      %p121 = por %p119, %p120
      %p122 = scmp.ne.s32.totalorder %s110, %s111
      %p123 = scmp.eq.s32.totalorder %s24, 1
      %p124 = por %p122, %p123
      %p126 = scmp.ne.s32.totalorder %s111, %s125
      %p127 = scmp.eq.s32.totalorder %s24, 0
      %p128 = por %p126, %p127
      %s130 = sadd.s32 %s129, 1
      %p133 = scmp.eq.s32.totalorder %s18, 1
      %p134 = scmp.ne.s32.totalorder %s129, %s131
      %p135 = scmp.eq.s32.totalorder %s18, 0
      %p136 = por %p134, %p135
      %p137 = scmp.ne.s32.totalorder %s129, %s131
      %p138 = scmp.eq.s32.totalorder %s23, 1
      %p139 = por %p137, %p138
      %p140 = scmp.ne.s32.totalorder %s131, %s132
      %p141 = scmp.eq.s32.totalorder %s23, 0
      %p142 = por %p140, %p141
      %p143 = scmp.ne.s32.totalorder %s131, %s132
      %p144 = scmp.eq.s32.totalorder %s24, 1
      %p145 = por %p143, %p144
      %p147 = scmp.ne.s32.totalorder %s132, %s146
      %p148 = scmp.eq.s32.totalorder %s24, 0
      %p149 = por %p147, %p148
      %s151 = sadd.s32 %s150, 1
      %p154 = scmp.eq.s32.totalorder %s18, 1
      %p155 = scmp.ne.s32.totalorder %s150, %s152
      %p156 = scmp.eq.s32.totalorder %s18, 0
      %p157 = por %p155, %p156
      %p158 = scmp.ne.s32.totalorder %s150, %s152
      %p159 = scmp.eq.s32.totalorder %s23, 1
      %p160 = por %p158, %p159
      %p161 = scmp.ne.s32.totalorder %s152, %s153
      %p162 = scmp.eq.s32.totalorder %s23, 0
      %p163 = por %p161, %p162
      %p164 = scmp.ne.s32.totalorder %s152, %s153
      %p165 = scmp.eq.s32.totalorder %s24, 1
      %p166 = por %p164, %p165
      %p168 = scmp.ne.s32.totalorder %s153, %s167
      %p169 = scmp.eq.s32.totalorder %s24, 0
      %p170 = por %p168, %p169
      %s172 = sadd.s32 %s171, 1
      %p175 = scmp.eq.s32.totalorder %s18, 1
      %p176 = scmp.ne.s32.totalorder %s171, %s173
      %p177 = scmp.eq.s32.totalorder %s18, 0
      %p178 = por %p176, %p177
      %p179 = scmp.ne.s32.totalorder %s171, %s173
      %p180 = scmp.eq.s32.totalorder %s23, 1
      %p181 = por %p179, %p180
      %p182 = scmp.ne.s32.totalorder %s173, %s174
      %p183 = scmp.eq.s32.totalorder %s23, 0
      %p184 = por %p182, %p183
      %p185 = scmp.ne.s32.totalorder %s173, %s174
      %p186 = scmp.eq.s32.totalorder %s24, 1
      %p187 = por %p185, %p186
      %p189 = scmp.ne.s32.totalorder %s174, %s188
      %p190 = scmp.eq.s32.totalorder %s24, 0
      %p191 = por %p189, %p190
      %s193 = sadd.s32 %s192, 1
      %p196 = scmp.eq.s32.totalorder %s18, 1
      %p197 = scmp.ne.s32.totalorder %s192, %s194
      %p198 = scmp.eq.s32.totalorder %s18, 0
      %p199 = por %p197, %p198
      %p200 = scmp.ne.s32.totalorder %s192, %s194
      %p201 = scmp.eq.s32.totalorder %s23, 1
      %p202 = por %p200, %p201
      %p203 = scmp.ne.s32.totalorder %s194, %s195
      %p204 = scmp.eq.s32.totalorder %s23, 0
      %p205 = por %p203, %p204
      %p206 = scmp.ne.s32.totalorder %s194, %s195
      %p207 = scmp.eq.s32.totalorder %s24, 1
      %p208 = por %p206, %p207
      %p210 = scmp.ne.s32.totalorder %s195, %s209
      %p211 = scmp.eq.s32.totalorder %s24, 0
      %p212 = por %p210, %p211
      %s214 = sadd.s32 %s213, 1
      %p217 = scmp.eq.s32.totalorder %s18, 1
      %p218 = scmp.ne.s32.totalorder %s213, %s215
      %p219 = scmp.eq.s32.totalorder %s18, 0
      %p220 = por %p218, %p219
      %p221 = scmp.ne.s32.totalorder %s213, %s215
      %p222 = scmp.eq.s32.totalorder %s23, 1
      %p223 = por %p221, %p222
      %p224 = scmp.ne.s32.totalorder %s215, %s216
      %p225 = scmp.eq.s32.totalorder %s23, 0
      %p226 = por %p224, %p225
      %p227 = scmp.ne.s32.totalorder %s215, %s216
      %p228 = scmp.eq.s32.totalorder %s24, 1
      %p229 = por %p227, %p228
      %p231 = scmp.ne.s32.totalorder %s216, %s230
      %p232 = scmp.eq.s32.totalorder %s24, 0
      %p233 = por %p231, %p232
      %s234 = ssub.s32 %s25, %s37
      %s235 = ssub.s32 %s26, %s33
      %s236 = sor.u32 %s234, %s235
      %p237 = scmp.eq.s32.totalorder %s236, 0
      %s239 = sadd.s32 %s238, 1
      %s240 = scalar_select %p237, %s238, %s239
      %p243 = pneg %p237
      %p244 = scmp.eq.s32.totalorder %s18, 1
      %p245 = por %p243, %p244
      %p246 = scmp.ne.s32.totalorder %s238, %s241
      %p247 = scmp.eq.s32.totalorder %s18, 0
      %p248 = por %p246, %p247
      %p249 = scmp.ne.s32.totalorder %s238, %s241
      %p250 = scmp.eq.s32.totalorder %s23, 1
      %p251 = por %p249, %p250
      %p252 = scmp.ne.s32.totalorder %s241, %s242
      %p253 = scmp.eq.s32.totalorder %s23, 0
      %p254 = por %p252, %p253
      %p255 = scmp.ne.s32.totalorder %s241, %s242
      %p256 = scmp.eq.s32.totalorder %s24, 1
      %p257 = por %p255, %p256
      %p259 = scmp.ne.s32.totalorder %s242, %s258
      %p260 = scmp.eq.s32.totalorder %s24, 0
      %p261 = por %p259, %p260
      %p262 = scmp.le.s32.totalorder 1, %s18
      %p263 = scmp.lt.s32.totalorder %s18, 3
      %p264 = pnand %p262, %p263
      %p265 = pneg %p264
      // Predicated region
      $region9: #{tpu_custom_call.1} parent=5 // pred_check
        _
      $region10: #{tpu_custom_call.1} parent=5 // pred_check_branch
        %267 = sbr.rel (%p264) target = $region12
      $region11: #{tpu_custom_call.1} parent=5 // pred_region
        %s268 = ssub.s32 %s18, 1
        // Predicated region
        $region13: #{tpu_custom_call.1} parent=11 // pred_check
          %p269 = pneg %p79
        $region14: #{tpu_custom_call.1} parent=11 // pred_check_branch
          %271 = sbr.rel (%p269) target = $region16
        $region15: #{tpu_custom_call.1} parent=11 // pred_region
          _
        $region16: #{tpu_custom_call.1} parent=11 // pred_fallthru
          _
        // Predicated region
        $region17: #{tpu_custom_call.1} parent=11 // pred_check
          %p272 = pneg %p100
        $region18: #{tpu_custom_call.1} parent=11 // pred_check_branch
          %274 = sbr.rel (%p272) target = $region20
        $region19: #{tpu_custom_call.1} parent=11 // pred_region
          _
        $region20: #{tpu_custom_call.1} parent=11 // pred_fallthru
          _
        // Predicated region
        $region21: #{tpu_custom_call.1} parent=11 // pred_check
          %p275 = pneg %p121
        $region22: #{tpu_custom_call.1} parent=11 // pred_check_branch
          %277 = sbr.rel (%p275) target = $region24
        $region23: #{tpu_custom_call.1} parent=11 // pred_region
          _
        $region24: #{tpu_custom_call.1} parent=11 // pred_fallthru
          _
        // Predicated region
        $region25: #{tpu_custom_call.1} parent=11 // pred_check
          %p278 = pneg %p142
        $region26: #{tpu_custom_call.1} parent=11 // pred_check_branch
          %280 = sbr.rel (%p278) target = $region28
        $region27: #{tpu_custom_call.1} parent=11 // pred_region
          _
        $region28: #{tpu_custom_call.1} parent=11 // pred_fallthru
          _
        // Predicated region
        $region29: #{tpu_custom_call.1} parent=11 // pred_check
          %p281 = pneg %p163
        $region30: #{tpu_custom_call.1} parent=11 // pred_check_branch
          %283 = sbr.rel (%p281) target = $region32
        $region31: #{tpu_custom_call.1} parent=11 // pred_region
          _
        $region32: #{tpu_custom_call.1} parent=11 // pred_fallthru
          _
        // Predicated region
        $region33: #{tpu_custom_call.1} parent=11 // pred_check
          %p284 = pneg %p184
        $region34: #{tpu_custom_call.1} parent=11 // pred_check_branch
          %286 = sbr.rel (%p284) target = $region36
        $region35: #{tpu_custom_call.1} parent=11 // pred_region
          _
        $region36: #{tpu_custom_call.1} parent=11 // pred_fallthru
          _
        // Predicated region
        $region37: #{tpu_custom_call.1} parent=11 // pred_check
          %p287 = pneg %p205
        $region38: #{tpu_custom_call.1} parent=11 // pred_check_branch
          %289 = sbr.rel (%p287) target = $region40
        $region39: #{tpu_custom_call.1} parent=11 // pred_region
          _
        $region40: #{tpu_custom_call.1} parent=11 // pred_fallthru
          _
        // Predicated region
        $region41: #{tpu_custom_call.1} parent=11 // pred_check
          %p290 = pneg %p226
        $region42: #{tpu_custom_call.1} parent=11 // pred_check_branch
          %292 = sbr.rel (%p290) target = $region44
        $region43: #{tpu_custom_call.1} parent=11 // pred_region
          _
        $region44: #{tpu_custom_call.1} parent=11 // pred_fallthru
          _
      $region12: #{tpu_custom_call.1} parent=5 // pred_fallthru
        _
      %p293 = scmp.lt.s32.totalorder %s18, 2
      // Predicated region
      $region45: #{tpu_custom_call.1} parent=5 // pred_check
        %p294 = pneg %p293
      $region46: #{tpu_custom_call.1} parent=5 // pred_check_branch
        %296 = sbr.rel (%p294) target = $region48
      $region47: #{tpu_custom_call.1} parent=5 // pred_region
        // Predicated region
        $region49: #{tpu_custom_call.1} parent=47 // pred_check
          %p297 = pneg %p52
        $region50: #{tpu_custom_call.1} parent=47 // pred_check_branch
          %299 = sbr.rel (%p297) target = $region52
        $region51: #{tpu_custom_call.1} parent=47 // pred_region
          %p300 = scmp.lt.s32.totalorder %s25, 1
          %s301 = scalar_select %p300, %s25, 1
          %p302 = scmp.lt.s32.totalorder %s26, 0
          %s303 = scalar_select %p302, %s26, 0
          %s304 = sadd.s32 %s303, %s301
          %s305 = smul.addr %s304, 4
          %s306 = scalar_lea.vmem %s0, %s305
        $region52: #{tpu_custom_call.1} parent=47 // pred_fallthru
          _
      $region48: #{tpu_custom_call.1} parent=5 // pred_fallthru
        _
      %p307 = scmp.le.s32.totalorder 1, %s18
      %p308 = scmp.lt.s32.totalorder %s18, 3
      %p309 = pnand %p307, %p308
      %p310 = pneg %p309
      // Predicated region
      $region53: #{tpu_custom_call.1} parent=5 // pred_check
        _
      $region54: #{tpu_custom_call.1} parent=5 // pred_check_branch
        %312 = sbr.rel (%p309) target = $region56
      $region55: #{tpu_custom_call.1} parent=5 // pred_region
        %s313 = ssub.s32 %s18, 1
        %p314 = scmp.lt.s32.totalorder %s27, 1
        %s315 = scalar_select %p314, %s27, 1
        %p316 = scmp.lt.s32.totalorder %s28, 0
        %s317 = scalar_select %p316, %s28, 0
        %s318 = sadd.s32 %s317, %s315
        %s319 = smul.addr %s318, 4
        %s320 = scalar_lea.vmem %s0, %s319
        %p321 = pneg %p58
        %p322 = pneg %p55
        %p323 = pneg %p79
        %p324 = pneg %p76
        %p325 = pneg %p100
        %p326 = pneg %p97
        %p327 = pneg %p121
        %p328 = pneg %p118
        %p329 = pneg %p142
        %p330 = pneg %p139
        %p331 = pneg %p163
        %p332 = pneg %p160
        %p333 = pneg %p184
        %p334 = pneg %p181
        %p335 = pneg %p205
        %p336 = pneg %p202
        %p337 = pneg %p226
        %p338 = pneg %p223
        %p339 = pneg %p254
        %p340 = pneg %p251
        %s341 = sand.u32 %s241, 1
        %s342 = scalar_lea.sflag [#allocation3], %s341
        %s343 = sand.u32 %s241, 1
        %s344 = smul.addr %s343, 80
        %s345 = scalar_lea.vmem [#allocation2], %s344
        %p346 = scmp.lt.s32.totalorder %s27, 1
        %s347 = scalar_select %p346, %s27, 1
        %p348 = scmp.lt.s32.totalorder %s28, 0
        %s349 = scalar_select %p348, %s28, 0
        %s350 = sadd.s32 %s349, %s347
        %s351 = smul.addr %s350, 4
        %s352 = scalar_lea.vmem %s0, %s351
        %v353 = vld [vmem:[%s352] sm:$0x7]
        %v354 = vld [vmem:[%s1] sm:$0xff]
        %v355 = vld [vmem:[%s1 + $0x8] sm:$0xff]
        %357 = vset.pattern.permute.xlu0 0
        %358 = vperm.xlu0 %357, %v354
        %v359 = vpop.permute.xlu0 %358
        %362 = vset.pattern.permute.xlu0 0
        %363 = vperm.xlu0 %362, %v355
        %v364 = vpop.permute.xlu0 %363
        %v366 = vlaneseq
        %v367 = vshrl.u32 %v366, 7
        %v368 = vsub.s32 0, %v367
        %v369 = vrot.slane %v353, %v368
        %v370 = vmul.f32 %v359, %v369
        %v371 = vmul.f32 %v364, %v369
        %372 = vset.pattern.permute.xlu0 1
        %373 = vperm.xlu0 %372, %v354
        %v374 = vpop.permute.xlu0 %373
        %376 = vset.pattern.permute.xlu0 1
        %377 = vperm.xlu0 %376, %v355
        %v378 = vpop.permute.xlu0 %377
        %v380 = vlaneseq
        %v381 = vshrl.u32 %v380, 7
        %v382 = vsub.s32 1, %v381
        %v383 = vrot.slane %v353, %v382
        %v384 = vmul.f32 %v374, %v383
        %v385 = vmul.f32 %v378, %v383
        %v386 = vadd.f32 %v370, %v384
        %v387 = vadd.f32 %v371, %v385
        %388 = vset.pattern.permute.xlu0 2
        %389 = vperm.xlu0 %388, %v354
        %v390 = vpop.permute.xlu0 %389
        %392 = vset.pattern.permute.xlu0 2
        %393 = vperm.xlu0 %392, %v355
        %v394 = vpop.permute.xlu0 %393
        %v396 = vlaneseq
        %v397 = vshrl.u32 %v396, 7
        %v398 = vsub.s32 2, %v397
        %v399 = vrot.slane %v353, %v398
        %v400 = vmul.f32 %v390, %v399
        %v401 = vmul.f32 %v394, %v399
        %v402 = vadd.f32 %v386, %v400
        %v403 = vadd.f32 %v387, %v401
        %v404 = vld [vmem:[%s2] sm:$0xff]
        %v405 = vld [vmem:[%s2 + $0x8] sm:$0xff]
        %407 = vset.pattern.permute.xlu0 0
        %408 = vperm.xlu0 %407, %v404
        %v409 = vpop.permute.xlu0 %408
        %412 = vset.pattern.permute.xlu0 0
        %413 = vperm.xlu0 %412, %v405
        %v414 = vpop.permute.xlu0 %413
        %v416 = vadd.f32 %v402, %v409
        %v417 = vadd.f32 %v403, %v414
        %v418 = vmax.f32 %v416, 0.0
        %v419 = vmax.f32 %v417, 0.0
        %v420 = vld [vmem:[%s3] sm:$0xff]
        %v421 = vld [vmem:[%s3 + $0x8] sm:$0xff]
        %v422 = vld [vmem:[%s3 + $0x10] sm:$0xff]
        %v423 = vld [vmem:[%s3 + $0x18] sm:$0xff]
        %v424 = vld [vmem:[%s4] sm:$0xff]
        %v425 = vld [vmem:[%s4 + $0x8] sm:$0xff]
        %v426 = vld [vmem:[%s4 + $0x10] sm:$0xff]
        %v427 = vld [vmem:[%s4 + $0x18] sm:$0xff]
        %429 = vset.pattern.permute.xlu0 0
        %430 = vperm.xlu0 %429, %v424
        %v431 = vpop.permute.xlu0 %430
        %434 = vset.pattern.permute.xlu0 0
        %435 = vperm.xlu0 %434, %v425
        %v436 = vpop.permute.xlu0 %435
        %439 = vset.pattern.permute.xlu0 0
        %440 = vperm.xlu0 %439, %v426
        %v441 = vpop.permute.xlu0 %440
        %444 = vset.pattern.permute.xlu0 0
        %445 = vperm.xlu0 %444, %v427
        %v446 = vpop.permute.xlu0 %445
        %vm448 = vcmask 130048
        %v450 = vsel %vm448, %v420, 0
        %v453 = vsel %vm448, %v421, 0
        %v456 = vsel %vm448, %v422, 0
        %v459 = vsel %vm448, %v423, 0
        %461 = vmatprep.subr.mxu0 0.0
        %462 = vmatpush1.msra.mxu0 %v418
        %463 = vmatprep.subr.mxu0 0.0
        %464 = vmatpush1.msra.mxu0 %v419
        %465 = vmatprep.subr.mxu0 0.0
        %466 = vmatpush1.msra.mxu0 0.0
        %467 = vmatprep.subr.mxu0 0.0
        %468 = vmatpush1.msra.mxu0 0.0
        %469 = vmatprep.subr.mxu0 0.0
        %470 = vmatpush1.msra.mxu0 0.0
        %471 = vmatprep.subr.mxu0 0.0
        %472 = vmatpush1.msra.mxu0 0.0
        %473 = vmatprep.subr.mxu0 0.0
        %474 = vmatpush1.msra.mxu0 0.0
        %475 = vmatprep.subr.mxu0 0.0
        %476 = vmatpush1.msra.mxu0 0.0
        %477 = vmatprep.subr.mxu0 0.0
        %478 = vmatpush1.msra.mxu0 0.0
        %479 = vmatprep.subr.mxu0 0.0
        %480 = vmatpush1.msra.mxu0 0.0
        %481 = vmatprep.subr.mxu0 0.0
        %482 = vmatpush1.msra.mxu0 0.0
        %483 = vmatprep.subr.mxu0 0.0
        %484 = vmatpush1.msra.mxu0 0.0
        %485 = vmatprep.subr.mxu0 0.0
        %486 = vmatpush1.msra.mxu0 0.0
        %487 = vmatprep.subr.mxu0 0.0
        %488 = vmatpush1.msra.mxu0 0.0
        %489 = vmatprep.subr.mxu0 0.0
        %490 = vmatpush1.msra.mxu0 0.0
        %491 = vmatprep.subr.mxu0 0.0
        %492 = vmatpush1.msra.mxu0 0.0
        %493 = vmatprep.subr.mxu0 0.0
        %494 = vmatpush1.msra.mxu0 0.0
        %495 = vmatprep.subr.mxu0 0.0
        %496 = vmatpush1.msra.mxu0 0.0
        %497 = vmatprep.subr.mxu0 0.0
        %498 = vmatpush1.msra.mxu0 0.0
        %499 = vmatprep.subr.mxu0 0.0
        %500 = vmatpush1.msra.mxu0 0.0
        %501 = vmatprep.subr.mxu0 0.0
        %502 = vmatpush1.msra.mxu0 0.0
        %503 = vmatprep.subr.mxu0 0.0
        %504 = vmatpush1.msra.mxu0 0.0
        %505 = vmatprep.subr.mxu0 0.0
        %506 = vmatpush1.msra.mxu0 0.0
        %507 = vmatprep.subr.mxu0 0.0
        %508 = vmatpush1.msra.mxu0 0.0
        %509 = vmatprep.subr.mxu0 0.0
        %510 = vmatpush1.msra.mxu0 0.0
        %511 = vmatprep.subr.mxu0 0.0
        %512 = vmatpush1.msra.mxu0 0.0
        %513 = vmatprep.subr.mxu0 0.0
        %514 = vmatpush1.msra.mxu0 0.0
        %515 = vmatprep.subr.mxu0 0.0
        %516 = vmatpush1.msra.mxu0 0.0
        %517 = vmatprep.subr.mxu0 0.0
        %518 = vmatpush1.msra.mxu0 0.0
        %519 = vmatprep.subr.mxu0 0.0
        %520 = vmatpush1.msra.mxu0 0.0
        %521 = vmatprep.subr.mxu0 0.0
        %522 = vmatpush1.msra.mxu0 0.0
        %523 = vmatprep.subr.mxu0 0.0
        %524 = vmatpush1.msra.mxu0 0.0
        %525 = vmatprep.mubr.f32.mxu0 0.0
        %526 = vmatmul.mubr.f32.gmra.mrb[0].mxu0 %v450
        %v527 = vpop.f32.mrb[0].mxu0
        %v528 = vadd.f32 %v431, %v527
        %v529 = vpop.f32.mrb[0].mxu0
        %530 = vmatprep.mubr.f32.mxu0 0.0
        %531 = vmatmul.mubr.f32.gmra.mrb[0].mxu0 %v453
        %v532 = vpop.f32.mrb[0].mxu0
        %v533 = vadd.f32 %v436, %v532
        %v534 = vpop.f32.mrb[0].mxu0
        %535 = vmatprep.mubr.f32.mxu0 0.0
        %536 = vmatmul.mubr.f32.gmra.mrb[0].mxu0 %v456
        %v537 = vpop.f32.mrb[0].mxu0
        %v538 = vadd.f32 %v441, %v537
        %v539 = vpop.f32.mrb[0].mxu0
        %540 = vmatprep.mubr.f32.mxu0 0.0
        %541 = vmatmul.mubr.f32.gmra.mrb[0].mxu0 %v459
        %v542 = vpop.f32.mrb[0].mxu0
        %v543 = vadd.f32 %v446, %v542
        %v544 = vpop.f32.mrb[0].mxu0
        %545 = vdwg.mxu0
        %v546 = vmax.f32 %v528, 0.0
        %v547 = vmax.f32 %v533, 0.0
        %v548 = vmax.f32 %v538, 0.0
        %v549 = vmax.f32 %v543, 0.0
        %v550 = vld [vmem:[%s5] sm:$0xff]
        %v551 = vld [vmem:[%s5 + $0x8] sm:$0xff]
        %v552 = vld [vmem:[%s5 + $0x10] sm:$0xff]
        %v553 = vld [vmem:[%s5 + $0x18] sm:$0xff]
        %v554 = vld [vmem:[%s5 + $0x20] sm:$0xff]
        %v555 = vld [vmem:[%s5 + $0x28] sm:$0xff]
        %v556 = vld [vmem:[%s5 + $0x30] sm:$0xff]
        %v557 = vld [vmem:[%s5 + $0x38] sm:$0xff]
        %v558 = vld [vmem:[%s6] sm:$0xff]
        %v559 = vld [vmem:[%s6 + $0x8] sm:$0xff]
        %v560 = vld [vmem:[%s6 + $0x10] sm:$0xff]
        %v561 = vld [vmem:[%s6 + $0x18] sm:$0xff]
        %v562 = vld [vmem:[%s6 + $0x20] sm:$0xff]
        %v563 = vld [vmem:[%s6 + $0x28] sm:$0xff]
        %v564 = vld [vmem:[%s6 + $0x30] sm:$0xff]
        %v565 = vld [vmem:[%s6 + $0x38] sm:$0xff]
        %567 = vset.pattern.permute.xlu0 0
        %568 = vperm.xlu0 %567, %v558
        %v569 = vpop.permute.xlu0 %568
        %572 = vset.pattern.permute.xlu0 0
        %573 = vperm.xlu0 %572, %v559
        %v574 = vpop.permute.xlu0 %573
        %577 = vset.pattern.permute.xlu0 0
        %578 = vperm.xlu0 %577, %v560
        %v579 = vpop.permute.xlu0 %578
        %582 = vset.pattern.permute.xlu0 0
        %583 = vperm.xlu0 %582, %v561
        %v584 = vpop.permute.xlu0 %583
        %587 = vset.pattern.permute.xlu0 0
        %588 = vperm.xlu0 %587, %v562
        %v589 = vpop.permute.xlu0 %588
        %592 = vset.pattern.permute.xlu0 0
        %593 = vperm.xlu0 %592, %v563
        %v594 = vpop.permute.xlu0 %593
        %597 = vset.pattern.permute.xlu0 0
        %598 = vperm.xlu0 %597, %v564
        %v599 = vpop.permute.xlu0 %598
        %602 = vset.pattern.permute.xlu0 0
        %603 = vperm.xlu0 %602, %v565
        %v604 = vpop.permute.xlu0 %603
        %vm606 = vcmask 261120
        %v608 = vsel %vm606, %v550, 0
        %v611 = vsel %vm606, %v551, 0
        %v614 = vsel %vm606, %v552, 0
        %v617 = vsel %vm606, %v553, 0
        %v620 = vsel %vm606, %v554, 0
        %v623 = vsel %vm606, %v555, 0
        %v626 = vsel %vm606, %v556, 0
        %v629 = vsel %vm606, %v557, 0
        %631 = vmatprep.subr.mxu0 0.0
        %632 = vmatpush1.msra.mxu0 %v546
        %633 = vmatprep.subr.mxu0 0.0
        %634 = vmatpush1.msra.mxu0 %v547
        %635 = vmatprep.subr.mxu0 0.0
        %636 = vmatpush1.msra.mxu0 %v548
        %637 = vmatprep.subr.mxu0 0.0
        %638 = vmatpush1.msra.mxu0 %v549
        %639 = vmatprep.subr.mxu0 0.0
        %640 = vmatpush1.msra.mxu0 0.0
        %641 = vmatprep.subr.mxu0 0.0
        %642 = vmatpush1.msra.mxu0 0.0
        %643 = vmatprep.subr.mxu0 0.0
        %644 = vmatpush1.msra.mxu0 0.0
        %645 = vmatprep.subr.mxu0 0.0
        %646 = vmatpush1.msra.mxu0 0.0
        %647 = vmatprep.subr.mxu0 0.0
        %648 = vmatpush1.msra.mxu0 0.0
        %649 = vmatprep.subr.mxu0 0.0
        %650 = vmatpush1.msra.mxu0 0.0
        %651 = vmatprep.subr.mxu0 0.0
        %652 = vmatpush1.msra.mxu0 0.0
        %653 = vmatprep.subr.mxu0 0.0
        %654 = vmatpush1.msra.mxu0 0.0
        %655 = vmatprep.subr.mxu0 0.0
        %656 = vmatpush1.msra.mxu0 0.0
        %657 = vmatprep.subr.mxu0 0.0
        %658 = vmatpush1.msra.mxu0 0.0
        %659 = vmatprep.subr.mxu0 0.0
        %660 = vmatpush1.msra.mxu0 0.0
        %661 = vmatprep.subr.mxu0 0.0
        %662 = vmatpush1.msra.mxu0 0.0
        %663 = vmatprep.subr.mxu0 0.0
        %664 = vmatpush1.msra.mxu0 0.0
        %665 = vmatprep.subr.mxu0 0.0
        %666 = vmatpush1.msra.mxu0 0.0
        %667 = vmatprep.subr.mxu0 0.0
        %668 = vmatpush1.msra.mxu0 0.0
        %669 = vmatprep.subr.mxu0 0.0
        %670 = vmatpush1.msra.mxu0 0.0
        %671 = vmatprep.subr.mxu0 0.0
        %672 = vmatpush1.msra.mxu0 0.0
        %673 = vmatprep.subr.mxu0 0.0
        %674 = vmatpush1.msra.mxu0 0.0
        %675 = vmatprep.subr.mxu0 0.0
        %676 = vmatpush1.msra.mxu0 0.0
        %677 = vmatprep.subr.mxu0 0.0
        %678 = vmatpush1.msra.mxu0 0.0
        %679 = vmatprep.subr.mxu0 0.0
        %680 = vmatpush1.msra.mxu0 0.0
        %681 = vmatprep.subr.mxu0 0.0
        %682 = vmatpush1.msra.mxu0 0.0
        %683 = vmatprep.subr.mxu0 0.0
        %684 = vmatpush1.msra.mxu0 0.0
        %685 = vmatprep.subr.mxu0 0.0
        %686 = vmatpush1.msra.mxu0 0.0
        %687 = vmatprep.subr.mxu0 0.0
        %688 = vmatpush1.msra.mxu0 0.0
        %689 = vmatprep.subr.mxu0 0.0
        %690 = vmatpush1.msra.mxu0 0.0
        %691 = vmatprep.subr.mxu0 0.0
        %692 = vmatpush1.msra.mxu0 0.0
        %693 = vmatprep.subr.mxu0 0.0
        %694 = vmatpush1.msra.mxu0 0.0
        %695 = vmatprep.mubr.f32.mxu0 0.0
        %696 = vmatmul.mubr.f32.gmra.mrb[0].mxu0 %v608
        %v697 = vpop.f32.mrb[0].mxu0
        %v698 = vadd.f32 %v569, %v697
        %v699 = vpop.f32.mrb[0].mxu0
        %700 = vmatprep.mubr.f32.mxu0 0.0
        %701 = vmatmul.mubr.f32.gmra.mrb[0].mxu0 %v611
        %v702 = vpop.f32.mrb[0].mxu0
        %v703 = vadd.f32 %v574, %v702
        %v704 = vpop.f32.mrb[0].mxu0
        %705 = vmatprep.mubr.f32.mxu0 0.0
        %706 = vmatmul.mubr.f32.gmra.mrb[0].mxu0 %v614
        %v707 = vpop.f32.mrb[0].mxu0
        %v708 = vadd.f32 %v579, %v707
        %v709 = vpop.f32.mrb[0].mxu0
        %710 = vmatprep.mubr.f32.mxu0 0.0
        %711 = vmatmul.mubr.f32.gmra.mrb[0].mxu0 %v617
        %v712 = vpop.f32.mrb[0].mxu0
        %v713 = vadd.f32 %v584, %v712
        %v714 = vpop.f32.mrb[0].mxu0
        %715 = vmatprep.mubr.f32.mxu0 0.0
        %716 = vmatmul.mubr.f32.gmra.mrb[0].mxu0 %v620
        %v717 = vpop.f32.mrb[0].mxu0
        %v718 = vadd.f32 %v589, %v717
        %v719 = vpop.f32.mrb[0].mxu0
        %720 = vmatprep.mubr.f32.mxu0 0.0
        %721 = vmatmul.mubr.f32.gmra.mrb[0].mxu0 %v623
        %v722 = vpop.f32.mrb[0].mxu0
        %v723 = vadd.f32 %v594, %v722
        %v724 = vpop.f32.mrb[0].mxu0
        %725 = vmatprep.mubr.f32.mxu0 0.0
        %726 = vmatmul.mubr.f32.gmra.mrb[0].mxu0 %v626
        %v727 = vpop.f32.mrb[0].mxu0
        %v728 = vadd.f32 %v599, %v727
        %v729 = vpop.f32.mrb[0].mxu0
        %730 = vmatprep.mubr.f32.mxu0 0.0
        %731 = vmatmul.mubr.f32.gmra.mrb[0].mxu0 %v629
        %v732 = vpop.f32.mrb[0].mxu0
        %v733 = vadd.f32 %v604, %v732
        %v734 = vpop.f32.mrb[0].mxu0
        %735 = vdwg.mxu0
        %v736 = vmax.f32 %v698, 0.0
        %v737 = vmax.f32 %v703, 0.0
        %v738 = vmax.f32 %v708, 0.0
        %v739 = vmax.f32 %v713, 0.0
        %v740 = vmax.f32 %v718, 0.0
        %v741 = vmax.f32 %v723, 0.0
        %v742 = vmax.f32 %v728, 0.0
        %v743 = vmax.f32 %v733, 0.0
        %v744 = vld [vmem:[%s7] sm:$0xff]
        %v745 = vld [vmem:[%s7 + $0x8] sm:$0xff]
        %v746 = vld [vmem:[%s7 + $0x10] sm:$0xff]
        %v747 = vld [vmem:[%s7 + $0x18] sm:$0xff]
        %v748 = vld [vmem:[%s7 + $0x20] sm:$0xff]
        %v749 = vld [vmem:[%s7 + $0x28] sm:$0xff]
        %v750 = vld [vmem:[%s7 + $0x30] sm:$0xff]
        %v751 = vld [vmem:[%s7 + $0x38] sm:$0xff]
        %v752 = vld [vmem:[%s7 + $0x40] sm:$0xff]
        %v753 = vld [vmem:[%s7 + $0x48] sm:$0xff]
        %v754 = vld [vmem:[%s8] sm:$0xff]
        %v755 = vld [vmem:[%s8 + $0x8] sm:$0xff]
        %v756 = vld [vmem:[%s8 + $0x10] sm:$0xff]
        %v757 = vld [vmem:[%s8 + $0x18] sm:$0xff]
        %v758 = vld [vmem:[%s8 + $0x20] sm:$0xff]
        %v759 = vld [vmem:[%s8 + $0x28] sm:$0xff]
        %v760 = vld [vmem:[%s8 + $0x30] sm:$0xff]
        %v761 = vld [vmem:[%s8 + $0x38] sm:$0xff]
        %v762 = vld [vmem:[%s8 + $0x40] sm:$0xff]
        %v763 = vld [vmem:[%s8 + $0x48] sm:$0xff]
        %765 = vset.pattern.permute.xlu0 0
        %766 = vperm.xlu0 %765, %v754
        %v767 = vpop.permute.xlu0 %766
        %770 = vset.pattern.permute.xlu0 0
        %771 = vperm.xlu0 %770, %v755
        %v772 = vpop.permute.xlu0 %771
        %775 = vset.pattern.permute.xlu0 0
        %776 = vperm.xlu0 %775, %v756
        %v777 = vpop.permute.xlu0 %776
        %780 = vset.pattern.permute.xlu0 0
        %781 = vperm.xlu0 %780, %v757
        %v782 = vpop.permute.xlu0 %781
        %785 = vset.pattern.permute.xlu0 0
        %786 = vperm.xlu0 %785, %v758
        %v787 = vpop.permute.xlu0 %786
        %790 = vset.pattern.permute.xlu0 0
        %791 = vperm.xlu0 %790, %v759
        %v792 = vpop.permute.xlu0 %791
        %795 = vset.pattern.permute.xlu0 0
        %796 = vperm.xlu0 %795, %v760
        %v797 = vpop.permute.xlu0 %796
        %800 = vset.pattern.permute.xlu0 0
        %801 = vperm.xlu0 %800, %v761
        %v802 = vpop.permute.xlu0 %801
        %805 = vset.pattern.permute.xlu0 0
        %806 = vperm.xlu0 %805, %v762
        %v807 = vpop.permute.xlu0 %806
        %810 = vset.pattern.permute.xlu0 0
        %811 = vperm.xlu0 %810, %v763
        %v812 = vpop.permute.xlu0 %811
        %vm814 = vcmask 523264
        %v816 = vsel %vm814, %v744, 0
        %v819 = vsel %vm814, %v745, 0
        %v822 = vsel %vm814, %v746, 0
        %v825 = vsel %vm814, %v747, 0
        %v828 = vsel %vm814, %v748, 0
        %v831 = vsel %vm814, %v749, 0
        %v834 = vsel %vm814, %v750, 0
        %v837 = vsel %vm814, %v751, 0
        %v840 = vsel %vm814, %v752, 0
        %v843 = vsel %vm814, %v753, 0
        %845 = vmatprep.subr.mxu0 0.0
        %846 = vmatpush1.msra.mxu0 %v736
        %847 = vmatprep.subr.mxu0 0.0
        %848 = vmatpush1.msra.mxu0 %v737
        %849 = vmatprep.subr.mxu0 0.0
        %850 = vmatpush1.msra.mxu0 %v738
        %851 = vmatprep.subr.mxu0 0.0
        %852 = vmatpush1.msra.mxu0 %v739
        %853 = vmatprep.subr.mxu0 0.0
        %854 = vmatpush1.msra.mxu0 %v740
        %855 = vmatprep.subr.mxu0 0.0
        %856 = vmatpush1.msra.mxu0 %v741
        %857 = vmatprep.subr.mxu0 0.0
        %858 = vmatpush1.msra.mxu0 %v742
        %859 = vmatprep.subr.mxu0 0.0
        %860 = vmatpush1.msra.mxu0 %v743
        %861 = vmatprep.subr.mxu0 0.0
        %862 = vmatpush1.msra.mxu0 0.0
        %863 = vmatprep.subr.mxu0 0.0
        %864 = vmatpush1.msra.mxu0 0.0
        %865 = vmatprep.subr.mxu0 0.0
        %866 = vmatpush1.msra.mxu0 0.0
        %867 = vmatprep.subr.mxu0 0.0
        %868 = vmatpush1.msra.mxu0 0.0
        %869 = vmatprep.subr.mxu0 0.0
        %870 = vmatpush1.msra.mxu0 0.0
        %871 = vmatprep.subr.mxu0 0.0
        %872 = vmatpush1.msra.mxu0 0.0
        %873 = vmatprep.subr.mxu0 0.0
        %874 = vmatpush1.msra.mxu0 0.0
        %875 = vmatprep.subr.mxu0 0.0
        %876 = vmatpush1.msra.mxu0 0.0
        %877 = vmatprep.subr.mxu0 0.0
        %878 = vmatpush1.msra.mxu0 0.0
        %879 = vmatprep.subr.mxu0 0.0
        %880 = vmatpush1.msra.mxu0 0.0
        %881 = vmatprep.subr.mxu0 0.0
        %882 = vmatpush1.msra.mxu0 0.0
        %883 = vmatprep.subr.mxu0 0.0
        %884 = vmatpush1.msra.mxu0 0.0
        %885 = vmatprep.subr.mxu0 0.0
        %886 = vmatpush1.msra.mxu0 0.0
        %887 = vmatprep.subr.mxu0 0.0
        %888 = vmatpush1.msra.mxu0 0.0
        %889 = vmatprep.subr.mxu0 0.0
        %890 = vmatpush1.msra.mxu0 0.0
        %891 = vmatprep.subr.mxu0 0.0
        %892 = vmatpush1.msra.mxu0 0.0
        %893 = vmatprep.subr.mxu0 0.0
        %894 = vmatpush1.msra.mxu0 0.0
        %895 = vmatprep.subr.mxu0 0.0
        %896 = vmatpush1.msra.mxu0 0.0
        %897 = vmatprep.subr.mxu0 0.0
        %898 = vmatpush1.msra.mxu0 0.0
        %899 = vmatprep.subr.mxu0 0.0
        %900 = vmatpush1.msra.mxu0 0.0
        %901 = vmatprep.subr.mxu0 0.0
        %902 = vmatpush1.msra.mxu0 0.0
        %903 = vmatprep.subr.mxu0 0.0
        %904 = vmatpush1.msra.mxu0 0.0
        %905 = vmatprep.subr.mxu0 0.0
        %906 = vmatpush1.msra.mxu0 0.0
        %907 = vmatprep.subr.mxu0 0.0
        %908 = vmatpush1.msra.mxu0 0.0
        %909 = vmatprep.mubr.f32.mxu0 0.0
        %910 = vmatmul.mubr.f32.gmra.mrb[0].mxu0 %v816
        %v911 = vpop.f32.mrb[0].mxu0
        %v912 = vadd.f32 %v767, %v911
        %v913 = vpop.f32.mrb[0].mxu0
        %914 = vmatprep.mubr.f32.mxu0 0.0
        %915 = vmatmul.mubr.f32.gmra.mrb[0].mxu0 %v819
        %v916 = vpop.f32.mrb[0].mxu0
        %v917 = vadd.f32 %v772, %v916
        %v918 = vpop.f32.mrb[0].mxu0
        %919 = vmatprep.mubr.f32.mxu0 0.0
        %920 = vmatmul.mubr.f32.gmra.mrb[0].mxu0 %v822
        %v921 = vpop.f32.mrb[0].mxu0
        %v922 = vadd.f32 %v777, %v921
        %v923 = vpop.f32.mrb[0].mxu0
        %924 = vmatprep.mubr.f32.mxu0 0.0
        %925 = vmatmul.mubr.f32.gmra.mrb[0].mxu0 %v825
        %v926 = vpop.f32.mrb[0].mxu0
        %v927 = vadd.f32 %v782, %v926
        %v928 = vpop.f32.mrb[0].mxu0
        %929 = vmatprep.mubr.f32.mxu0 0.0
        %930 = vmatmul.mubr.f32.gmra.mrb[0].mxu0 %v828
        %v931 = vpop.f32.mrb[0].mxu0
        %v932 = vadd.f32 %v787, %v931
        %v933 = vpop.f32.mrb[0].mxu0
        %934 = vmatprep.mubr.f32.mxu0 0.0
        %935 = vmatmul.mubr.f32.gmra.mrb[0].mxu0 %v831
        %v936 = vpop.f32.mrb[0].mxu0
        %v937 = vadd.f32 %v792, %v936
        %v938 = vpop.f32.mrb[0].mxu0
        %939 = vmatprep.mubr.f32.mxu0 0.0
        %940 = vmatmul.mubr.f32.gmra.mrb[0].mxu0 %v834
        %v941 = vpop.f32.mrb[0].mxu0
        %v942 = vadd.f32 %v797, %v941
        %v943 = vpop.f32.mrb[0].mxu0
        %944 = vmatprep.mubr.f32.mxu0 0.0
        %945 = vmatmul.mubr.f32.gmra.mrb[0].mxu0 %v837
        %v946 = vpop.f32.mrb[0].mxu0
        %v947 = vadd.f32 %v802, %v946
        %v948 = vpop.f32.mrb[0].mxu0
        %949 = vmatprep.mubr.f32.mxu0 0.0
        %950 = vmatmul.mubr.f32.gmra.mrb[0].mxu0 %v840
        %v951 = vpop.f32.mrb[0].mxu0
        %v952 = vadd.f32 %v807, %v951
        %v953 = vpop.f32.mrb[0].mxu0
        %954 = vmatprep.mubr.f32.mxu0 0.0
        %955 = vmatmul.mubr.f32.gmra.mrb[0].mxu0 %v843
        %v956 = vpop.f32.mrb[0].mxu0
        %v957 = vadd.f32 %v812, %v956
        %v958 = vpop.f32.mrb[0].mxu0
        %959 = vdwg.mxu0
        %v960 = vtanh.pop %v912
        %v961 = vtanh.pop %v917
        %v962 = vtanh.pop %v922
        %v963 = vtanh.pop %v927
        %v964 = vtanh.pop %v932
        %v965 = vtanh.pop %v937
        %v966 = vtanh.pop %v942
        %v967 = vtanh.pop %v947
        %v968 = vtanh.pop %v952
        %v969 = vtanh.pop %v957
        %970 = vst [vmem:[%s345] sm:$0xff] %v960
        %971 = vst [vmem:[%s345 + $0x8] sm:$0xff] %v961
        %972 = vst [vmem:[%s345 + $0x10] sm:$0xff] %v962
        %973 = vst [vmem:[%s345 + $0x18] sm:$0xff] %v963
        %974 = vst [vmem:[%s345 + $0x20] sm:$0xff] %v964
        %975 = vst [vmem:[%s345 + $0x28] sm:$0xff] %v965
        %976 = vst [vmem:[%s345 + $0x30] sm:$0xff] %v966
        %977 = vst [vmem:[%s345 + $0x38] sm:$0xff] %v967
        %978 = vst [vmem:[%s345 + $0x40] sm:$0xff] %v968
        %979 = vst [vmem:[%s345 + $0x48] sm:$0xff] %v969
        %s980 = sand.u32 %s241, 1
        %s981 = scalar_lea.sflag [#allocation3], %s980
        %s982 = sand.u32 %s241, 1
        %s983 = smul.addr %s982, 80
        %s984 = scalar_lea.vmem [#allocation2], %s983
        // Predicated region
        $region57: #{tpu_custom_call.1} parent=55 // pred_check
          %p985 = pneg %p251
        $region58: #{tpu_custom_call.1} parent=55 // pred_check_branch
          %987 = sbr.rel (%p985) target = $region60
        $region59: #{tpu_custom_call.1} parent=55 // pred_region
          %s989 = ssub.s32 1280, 1280
          %990 = vsyncadd %s981, %s989
          %s991 = smul.addr %s27, 10
          %s992 = sadd.s32 %s28, %s991
          %s993 = smul.addr %s992, 128
          %s994 = scalar_lea.hbm %s9, %s993
          %s995 = sshll.u32 %s984, 4
          %s996 = int_to_ptr.vmem [resolvable:$true] %s995
          %1001 = dma.vmem_to_hbm [thread:$0]  %s996, 1280, %s994, %s981, 128, 128, 8
        $region60: #{tpu_custom_call.1} parent=55 // pred_fallthru
          _
      $region56: #{tpu_custom_call.1} parent=5 // pred_fallthru
        _
      %p1002 = scmp.le.s32.totalorder 2, %s18
      // Predicated region
      $region61: #{tpu_custom_call.1} parent=5 // pred_check
        %p1003 = pneg %p1002
      $region62: #{tpu_custom_call.1} parent=5 // pred_check_branch
        %1005 = sbr.rel (%p1003) target = $region64
      $region63: #{tpu_custom_call.1} parent=5 // pred_region
        %s1006 = ssub.s32 %s18, 2
        // Predicated region
        $region65: #{tpu_custom_call.1} parent=63 // pred_check
          %p1007 = pneg %p257
        $region66: #{tpu_custom_call.1} parent=63 // pred_check_branch
          %1009 = sbr.rel (%p1007) target = $region68
        $region67: #{tpu_custom_call.1} parent=63 // pred_region
          %s1010 = sand.u32 %s242, 1
          %s1011 = scalar_lea.sflag [#allocation3], %s1010
          %s1012 = sand.u32 %s242, 1
          %s1013 = smul.addr %s1012, 80
          %s1014 = scalar_lea.vmem [#allocation2], %s1013
          %1015 = dma.done %s1011, 1280
        $region68: #{tpu_custom_call.1} parent=63 // pred_fallthru
          _
      $region64: #{tpu_custom_call.1} parent=5 // pred_fallthru
        _
    $region6: #{tpu_custom_call.1} parent=1 // loop_footer
      %s22 = sadd.s32 1, %s18
    $region7: #{tpu_custom_call.1} parent=1 // loop_footer_branch
      %17 = sbr.rel target = $region3
    $region8: #{tpu_custom_call.1} parent=1 // loop_exit
      _
    %1016 = vsyncpa [#allocation3], 1
    %s1017 = scalar_lea.sflag [#allocation3], 1
    %1018 = vsyncpa %s1017, 1

</llo_original>
